<compile_context>
chip_gen: v7x
topology: tpu7x:2x2x1
jax: 0.10.0
libtpu: 0.0.40
codegen_flags: <defaults>
</compile_context>

<pallas_src>
import functools
import math

import jax
import jax.numpy as jnp
import numpy as np
from jax.experimental import pallas as pl
from jax.experimental.pallas import tpu as pltpu


def _fused_head_kernel(x_ref, w1_ref, b1_ref, w2_ref, b2_ref, u2t_ref,
                       head_ref, score_ref, mask_ref, *, hw):
    """conv3x3 (single K=36 matmul, bias+BN folded) + ReLU + conv1x1 + bias,
    then fused bilinear upsample (constant-matrix matmul) + sigmoid/threshold.

    x_ref   : (9*Cin, B*HW)  im2col'd 3x3 taps, channel-major, pixels on lanes
    w1_ref  : (Cmid, 9*Cin)  conv1 weights with BN(eval) scale folded in
    b1_ref  : (Cmid, 1)      conv1 bias with BN(eval) affine folded in
    w2_ref  : (Cout, Cmid)   conv2 (1x1) weights
    b2_ref  : (Cout, 1)      conv2 bias
    u2t_ref : (HW, Ho*Wo)    kron(U_h, U_w)^T bilinear-resize operator
    head_ref: (Cout, B*HW)   pre-upsample conv head output (lane-dense)
    score_ref: (1, Ho*Wo)    sigmoid(text) of batch 0, flattened row-major
    mask_ref : (1, Ho*Wo)    uint8 (text>1)&(kernel>1) of batch 0, flattened
    """
    # conv1 (3x3, pad=1) as ONE K=36 MXU matmul; bias+BN pre-folded; ReLU.
    h1 = jnp.dot(w1_ref[...], x_ref[...], preferred_element_type=jnp.float32)
    h1 = jnp.maximum(h1 + b1_ref[...], 0.0)                      # (Cmid, B*HW)

    # conv2 (1x1) + bias.
    out = jnp.dot(w2_ref[...], h1,
                  preferred_element_type=jnp.float32) + b2_ref[...]
    head_ref[...] = out                                          # (Cout, B*HW)

    # Fused post-processing on batch 0: the x`scale` bilinear upsample is a
    # constant matrix (half-pixel 0.25/0.75 pattern) -> one more MXU matmul,
    # then sigmoid / dual threshold with a compact uint8 mask store.
    up = jnp.dot(out[:, 0:hw], u2t_ref[...],
                 preferred_element_type=jnp.float32)             # (Cout, Ho*Wo)
    text_up = up[0:1, :]
    kern_up = up[3:4, :]
    score_ref[...] = jax.nn.sigmoid(text_up)
    mask_ref[...] = jnp.where((text_up > 1.0) & (kern_up > 1.0),
                              1, 0).astype(jnp.uint8)


def _bilinear_resize_matrix(n_in, n_out, align_corners):
    """(n_out, n_in) matrix reproducing F.interpolate's 1-D bilinear weights
    (half-pixel centres with clamp-at-0 when align_corners=False)."""
    if align_corners:
        if n_out == 1:
            src = np.zeros((1,), np.float64)
        else:
            src = np.arange(n_out, dtype=np.float64) * (n_in - 1) / (n_out - 1)
    else:
        src = (np.arange(n_out, dtype=np.float64) + 0.5) * (n_in / n_out) - 0.5
        src = np.maximum(src, 0.0)
    i0 = np.clip(np.floor(src).astype(np.int64), 0, n_in - 1)
    i1 = np.minimum(i0 + 1, n_in - 1)
    frac = src - i0
    u = np.zeros((n_out, n_in), np.float64)
    u[np.arange(n_out), i0] += 1.0 - frac
    u[np.arange(n_out), i1] += frac
    return u


def _im2col_taps(x_nchw):
    """(B, Cin, H, W) -> (9*Cin, B*H*W) channel-major 3x3 taps (zero padded).

    Pure layout plumbing; it is fused by XLA under jit so it adds no extra
    dispatches at runtime.
    # TODO(synk): at production resolutions build the taps in-kernel
    # (pltpu.roll + border masks) to avoid the 9x HBM duplication, tile the
    # pixel axis in the BlockSpec, and add a 2-way parallel split for v7x's
    # two TensorCores.
    """
    B, Cin, H, W = x_nchw.shape
    x_cm = jnp.transpose(x_nchw, (1, 0, 2, 3))                # (Cin, B, H, W)
    x_pad = jnp.pad(x_cm, ((0, 0), (0, 0), (1, 1), (1, 1)))
    taps = [x_pad[:, :, ky:ky + H, kx:kx + W]
            for ky in range(3) for kx in range(3)]
    return jnp.stack(taps, axis=0).reshape(9 * Cin, B * H * W)


def _forward_impl(x_nchw, params, *, scale, align_corners):
    B, Cin, H, W = x_nchw.shape
    w1 = params["w1"]                        # (3, 3, Cin, Cmid)  HWIO
    Cmid = w1.shape[-1]
    w2 = params["w2"]                        # (Cmid, Cout)
    Cout = w2.shape[-1]
    HW = H * W
    NQ = B * HW
    Ho, Wo = int(scale * H), int(scale * W)

    # Fold conv1 bias + BatchNorm(eval) affine into the conv1 weights.
    bn_s = params["bn_scale"]
    bn_b = params["bn_shift"]
    w1_eff = w1 * bn_s                                        # (3,3,Cin,Cmid)
    b1_eff = params["b1"] * bn_s + bn_b                       # (Cmid,)
    w1_mat = w1_eff.reshape(9 * Cin, Cmid).T                  # (Cmid, 9*Cin)
    w2_mat = w2.T                                             # (Cout, Cmid)
    b1_col = b1_eff.reshape(Cmid, 1)
    b2_col = params["b2"].reshape(Cout, 1)

    # Constant bilinear-resize operator: kron of the two 1-D operators,
    # transposed so the in-kernel upsample is `head[:, :HW] @ u2t`.
    u_h = _bilinear_resize_matrix(H, Ho, align_corners)
    u_w = _bilinear_resize_matrix(W, Wo, align_corners)
    u2t = jnp.asarray(np.kron(u_h, u_w).T, dtype=jnp.float32)  # (HW, Ho*Wo)

    x_taps = _im2col_taps(x_nchw).astype(jnp.float32)          # (9*Cin, B*HW)

    vmem = pl.BlockSpec(memory_space=pltpu.MemorySpace.VMEM)
    head_flat, score_flat, mask_flat = pl.pallas_call(
        functools.partial(_fused_head_kernel, hw=HW),
        out_shape=(
            jax.ShapeDtypeStruct((Cout, NQ), jnp.float32),
            jax.ShapeDtypeStruct((1, Ho * Wo), jnp.float32),
            jax.ShapeDtypeStruct((1, Ho * Wo), jnp.uint8),
        ),
        in_specs=[vmem] * 6,
        out_specs=(vmem, vmem, vmem),
    )(x_taps,
      w1_mat.astype(jnp.float32), b1_col.astype(jnp.float32),
      w2_mat.astype(jnp.float32), b2_col.astype(jnp.float32), u2t)

    score = score_flat.reshape(Ho, Wo)
    kernel_mask = mask_flat.reshape(Ho, Wo)
    return score, kernel_mask, head_flat


@functools.partial(jax.jit, static_argnames=("scale", "align_corners"))
def simple_dilate_head_forward(x_nchw, params, *, scale=2, align_corners=False):
    """Inference forward of SIMPLE_DILATE_HEAD (is_train=False branch)."""
    # interpolation_mode='bilinear' assumed (the configured mode).
    score, kernel_mask, _ = _forward_impl(
        x_nchw, params, scale=scale, align_corners=align_corners)
    return score, kernel_mask


def make_params(key, in_ch, mid_ch, num_class):
    k1, k2, k3, k4, k5, k6 = jax.random.split(key, 6)
    # conv weight init: normal(0, sqrt(2 / (k*k*out_channels)))
    std1 = math.sqrt(2.0 / (3 * 3 * mid_ch))
    w1 = jax.random.normal(k1, (3, 3, in_ch, mid_ch), jnp.float32) * std1  # HWIO
    b1 = jax.random.uniform(k2, (mid_ch,), jnp.float32, -0.1, 0.1)         # USE_BIAS
    std2 = math.sqrt(2.0 / (1 * 1 * num_class))
    w2 = jax.random.normal(k3, (mid_ch, num_class), jnp.float32) * std2    # 1x1 -> (Cin,Cout)
    b2 = jax.random.uniform(k4, (num_class,), jnp.float32, -0.1, 0.1)
    # BatchNorm2d eval-mode affine (module init: weight=1, bias=0); use
    # non-trivial running stats so the weight/bias fold is actually exercised.
    eps = 1e-5
    gamma = jnp.ones((mid_ch,), jnp.float32)
    beta = jnp.zeros((mid_ch,), jnp.float32)
    running_mean = 0.1 * jax.random.normal(k5, (mid_ch,), jnp.float32)
    running_var = 1.0 + 0.1 * jax.random.uniform(k6, (mid_ch,), jnp.float32)
    bn_scale = gamma / jnp.sqrt(running_var + eps)
    bn_shift = beta - running_mean * bn_scale
    return dict(w1=w1, b1=b1, w2=w2, b2=b2, bn_scale=bn_scale, bn_shift=bn_shift)


def _upsample_bilinear_nchw_ref(x, out_h, out_w, align_corners=False):
    """Plain-JAX gather-based reference matching F.interpolate('bilinear')."""
    B, C, H, W = x.shape
    if align_corners:
        ys = jnp.linspace(0.0, H - 1.0, out_h)
        xs = jnp.linspace(0.0, W - 1.0, out_w)
    else:
        ys = jnp.maximum((jnp.arange(out_h, dtype=jnp.float32) + 0.5)
                         * (H / out_h) - 0.5, 0.0)
        xs = jnp.maximum((jnp.arange(out_w, dtype=jnp.float32) + 0.5)
                         * (W / out_w) - 0.5, 0.0)
    y0 = jnp.clip(jnp.floor(ys).astype(jnp.int32), 0, H - 1)
    x0 = jnp.clip(jnp.floor(xs).astype(jnp.int32), 0, W - 1)
    y1 = jnp.minimum(y0 + 1, H - 1)
    x1 = jnp.minimum(x0 + 1, W - 1)
    wy = (ys - y0.astype(jnp.float32))[:, None]
    wx = (xs - x0.astype(jnp.float32))[None, :]
    v00 = x[:, :, y0[:, None], x0[None, :]]
    v01 = x[:, :, y0[:, None], x1[None, :]]
    v10 = x[:, :, y1[:, None], x0[None, :]]
    v11 = x[:, :, y1[:, None], x1[None, :]]
    return (v00 * (1 - wy) * (1 - wx) + v01 * (1 - wy) * wx
            + v10 * wy * (1 - wx) + v11 * wy * wx)


if __name__ == "__main__":
    B, IN_CH, MID_CH, NUM_CLASS = 2, 4, 32, 4
    H, W = 16, 16
    SCALE, ALIGN_CORNERS = 2, False

    key = jax.random.PRNGKey(0)
    kx, kp = jax.random.split(key)
    x = jax.random.normal(kx, (B, IN_CH, H, W), jnp.float32)   # NCHW like PyTorch
    params = make_params(kp, IN_CH, MID_CH, NUM_CLASS)

    # Run the fused Pallas-backed forward once and block on the result.
    score, kernel_mask = jax.block_until_ready(
        simple_dilate_head_forward(x, params, scale=SCALE,
                                   align_corners=ALIGN_CORNERS))

    # ---- correctness check vs a plain-JAX/XLA reference -------------------
    _, _, head_flat = _forward_impl(x, params, scale=SCALE,
                                    align_corners=ALIGN_CORNERS)
    head_nchw = jnp.transpose(head_flat.reshape(NUM_CLASS, B, H, W),
                              (1, 0, 2, 3))

    hi = jax.lax.Precision.HIGHEST
    w1_oihw = jnp.transpose(params["w1"], (3, 2, 0, 1))
    ref = jax.lax.conv_general_dilated(
        x, w1_oihw, (1, 1), "SAME",
        dimension_numbers=("NCHW", "OIHW", "NCHW"), precision=hi)
    ref = ref + params["b1"][None, :, None, None]
    ref = ref * params["bn_scale"][None, :, None, None] \
        + params["bn_shift"][None, :, None, None]
    ref = jnp.maximum(ref, 0.0)
    ref = jnp.einsum("bchw,co->bohw", ref, params["w2"], precision=hi) \
        + params["b2"][None, :, None, None]

    assert head_nchw.shape == (B, NUM_CLASS, H, W)
    assert np.allclose(np.asarray(head_nchw), np.asarray(ref),
                       rtol=1e-4, atol=1e-5), "Pallas conv head mismatch"

    ref_up = _upsample_bilinear_nchw_ref(ref, SCALE * H, SCALE * W,
                                         align_corners=ALIGN_CORNERS)
    ref_text, ref_kern = ref_up[0, 0], ref_up[0, 3]
    ref_score = jax.nn.sigmoid(ref_text)
    ref_mask = ((ref_text > 1.0) & (ref_kern > 1.0)).astype(jnp.uint8)

    assert score.shape == (SCALE * H, SCALE * W) and score.dtype == jnp.float32
    assert kernel_mask.shape == (SCALE * H, SCALE * W)
    assert kernel_mask.dtype == jnp.uint8
    assert np.allclose(np.asarray(score), np.asarray(ref_score),
                       rtol=1e-4, atol=1e-5), "score mismatch"
    # Mask must agree wherever the reference is not razor-thin at the 1.0
    # threshold (guards against f32 accumulation-order boundary flips).
    clear = (np.abs(np.asarray(ref_text) - 1.0) > 1e-3) \
        & (np.abs(np.asarray(ref_kern) - 1.0) > 1e-3)
    assert np.array_equal(np.asarray(kernel_mask)[clear],
                          np.asarray(ref_mask)[clear]), "kernel mask mismatch"

    print("KERNEL_OK")
</pallas_src>

<mosaic_0001>
module attributes {stable_mosaic.version = 11 : i64} {
  func.func @_fused_head_kernel(%arg0: memref<36x512xf32, #tpu.memory_space<vmem>>, %arg1: memref<32x36xf32, #tpu.memory_space<vmem>>, %arg2: memref<32x1xf32, #tpu.memory_space<vmem>>, %arg3: memref<4x32xf32, #tpu.memory_space<vmem>>, %arg4: memref<4x1xf32, #tpu.memory_space<vmem>>, %arg5: memref<256x1024xf32, #tpu.memory_space<vmem>>, %arg6: memref<4x512xf32, #tpu.memory_space<vmem>>, %arg7: memref<1x1024xf32, #tpu.memory_space<vmem>>, %arg8: memref<1x1024xi8, #tpu.memory_space<vmem>>) attributes {dimension_semantics = [], scalar_prefetch = 0 : i64, scratch_operands = 0 : i64, tpu.core_type = #tpu.core_type<tc>} {
    %c0 = arith.constant 0 : index
    %c0_0 = arith.constant 0 : index
    %0 = vector.load %arg1[%c0, %c0_0] : memref<32x36xf32, #tpu.memory_space<vmem>>, vector<32x36xf32>
    %c0_1 = arith.constant 0 : index
    %c0_2 = arith.constant 0 : index
    %1 = vector.load %arg0[%c0_1, %c0_2] : memref<36x512xf32, #tpu.memory_space<vmem>>, vector<36x512xf32>
    %cst = arith.constant dense<0.000000e+00> : vector<32x512xf32>
    %2 = tpu.matmul %0, %1, %cst {dimension_numbers = #tpu.dot_dimension_numbers<[1], [0], [0], [1], [0, 0, 1, 1], [], []>} : vector<32x36xf32>, vector<36x512xf32>, vector<32x512xf32> -> vector<32x512xf32>
    %c0_3 = arith.constant 0 : index
    %c0_4 = arith.constant 0 : index
    %3 = vector.load %arg2[%c0_3, %c0_4] : memref<32x1xf32, #tpu.memory_space<vmem>>, vector<32x1xf32>
    %4 = vector.broadcast %3 : vector<32x1xf32> to vector<32x512xf32>
    %5 = arith.addf %2, %4 : vector<32x512xf32>
    %cst_5 = arith.constant 0.000000e+00 : f32
    %6 = vector.broadcast %cst_5 : f32 to vector<32x512xf32>
    %7 = arith.maximumf %5, %6 : vector<32x512xf32>
    %c0_6 = arith.constant 0 : index
    %c0_7 = arith.constant 0 : index
    %8 = vector.load %arg3[%c0_6, %c0_7] : memref<4x32xf32, #tpu.memory_space<vmem>>, vector<4x32xf32>
    %cst_8 = arith.constant dense<0.000000e+00> : vector<4x512xf32>
    %9 = tpu.matmul %8, %7, %cst_8 {dimension_numbers = #tpu.dot_dimension_numbers<[1], [0], [0], [1], [0, 0, 1, 1], [], []>} : vector<4x32xf32>, vector<32x512xf32>, vector<4x512xf32> -> vector<4x512xf32>
    %c0_9 = arith.constant 0 : index
    %c0_10 = arith.constant 0 : index
    %10 = vector.load %arg4[%c0_9, %c0_10] : memref<4x1xf32, #tpu.memory_space<vmem>>, vector<4x1xf32>
    %11 = vector.broadcast %10 : vector<4x1xf32> to vector<4x512xf32>
    %12 = arith.addf %9, %11 : vector<4x512xf32>
    %c0_11 = arith.constant 0 : index
    %c0_12 = arith.constant 0 : index
    %13 = vector.load %arg6[%c0_11, %c0_12] : memref<4x512xf32, #tpu.memory_space<vmem>>, vector<4x512xf32>
    tpu.vector_store %arg6[%c0_11, %c0_12], %12 {strides = array<i32>} : memref<4x512xf32, #tpu.memory_space<vmem>>, vector<4x512xf32>,
    %14 = vector.extract_strided_slice %12 {offsets = [0, 0], sizes = [4, 256], strides = [1, 1]} : vector<4x512xf32> to vector<4x256xf32>
    %c0_13 = arith.constant 0 : index
    %c0_14 = arith.constant 0 : index
    %15 = vector.load %arg5[%c0_13, %c0_14] : memref<256x1024xf32, #tpu.memory_space<vmem>>, vector<256x1024xf32>
    %cst_15 = arith.constant dense<0.000000e+00> : vector<4x1024xf32>
    %16 = tpu.matmul %14, %15, %cst_15 {dimension_numbers = #tpu.dot_dimension_numbers<[1], [0], [0], [1], [0, 0, 1, 1], [], []>} : vector<4x256xf32>, vector<256x1024xf32>, vector<4x1024xf32> -> vector<4x1024xf32>
    %17 = vector.extract_strided_slice %16 {offsets = [0, 0], sizes = [1, 1024], strides = [1, 1]} : vector<4x1024xf32> to vector<1x1024xf32>
    %18 = vector.extract_strided_slice %16 {offsets = [3, 0], sizes = [1, 1024], strides = [1, 1]} : vector<4x1024xf32> to vector<1x1024xf32>
    %19 = arith.negf %17 : vector<1x1024xf32>
    %20 = math.exp %19 : vector<1x1024xf32>
    %cst_16 = arith.constant 1.000000e+00 : f32
    %21 = vector.broadcast %cst_16 : f32 to vector<1x1024xf32>
    %22 = arith.addf %21, %20 : vector<1x1024xf32>
    %23 = arith.divf %21, %22 : vector<1x1024xf32>
    %c0_17 = arith.constant 0 : index
    %c0_18 = arith.constant 0 : index
    %24 = vector.load %arg7[%c0_17, %c0_18] : memref<1x1024xf32, #tpu.memory_space<vmem>>, vector<1x1024xf32>
    tpu.vector_store %arg7[%c0_17, %c0_18], %23 {strides = array<i32>} : memref<1x1024xf32, #tpu.memory_space<vmem>>, vector<1x1024xf32>,
    %cst_19 = arith.constant 1.000000e+00 : f32
    %25 = vector.broadcast %cst_19 : f32 to vector<1x1024xf32>
    %26 = arith.cmpf ogt, %17, %25 : vector<1x1024xf32>
    %cst_20 = arith.constant 1.000000e+00 : f32
    %27 = vector.broadcast %cst_20 : f32 to vector<1x1024xf32>
    %28 = arith.cmpf ogt, %18, %27 : vector<1x1024xf32>
    %29 = arith.andi %26, %28 : vector<1x1024xi1>
    %c1_i32 = arith.constant 1 : i32
    %c0_i32 = arith.constant 0 : i32
    %30 = vector.broadcast %c1_i32 : i32 to vector<1x1024xi32>
    %31 = vector.broadcast %c0_i32 : i32 to vector<1x1024xi32>
    %32 = arith.select %29, %30, %31 : vector<1x1024xi1>, vector<1x1024xi32>
    %33 = arith.trunci %32 : vector<1x1024xi32> to vector<1x1024xi8>
    %c0_21 = arith.constant 0 : index
    %c0_22 = arith.constant 0 : index
    %34 = vector.load %arg8[%c0_21, %c0_22] : memref<1x1024xi8, #tpu.memory_space<vmem>>, vector<1x1024xi8>
    tpu.vector_store %arg8[%c0_21, %c0_22], %33 {strides = array<i32>} : memref<1x1024xi8, #tpu.memory_space<vmem>>, vector<1x1024xi8>,
    return
  }
}

</mosaic_0001>

<llo_original>
// kernel: simple_dilate_head_forward.1
$region0: #{simple_dilate_head_forward.1}
  #allocation0 [shape = 'u32[]', space=smem, size = 0x4, offset = 0x4, fixed_abs, tag = 'smem constant byte address 0x4 - core index']
  #allocation1 [shape = 'u32[144,128]{1,0:T(1,128)}', space=vmem, size = 0x12000, scoped, tag = 'internal scratch']
  %s0 = inlined_call_operand.vmem [shape: f32[36,512], index: 0, kind: input, shape index: {}]
  %s1 = inlined_call_operand.vmem [shape: f32[32,36], index: 1, kind: input, shape index: {}]
  %s2 = inlined_call_operand.vmem [shape: f32[32,1], index: 2, kind: input, shape index: {}]
  %s3 = inlined_call_operand.vmem [shape: f32[4,32], index: 3, kind: input, shape index: {}]
  %s4 = inlined_call_operand.vmem [shape: f32[4,1], index: 4, kind: input, shape index: {}]
  %s5 = inlined_call_operand.vmem [shape: f32[256,1024], index: 5, kind: input, shape index: {}]
  %s6 = inlined_call_operand.hbm [shape: f32[4,512], index: 6, kind: output, shape index: {0}]
  %s7 = inlined_call_operand.vmem [shape: f32[1,1024], index: 7, kind: output, shape index: {1}]
  %s8 = inlined_call_operand.vmem [shape: u8[1,1024], index: 8, kind: output, shape index: {2}]
  %9 = xla_tuple %s6, %s7, %s8
  %s10 = sld [smem:[#allocation0]]
  $region50: #{simple_dilate_head_forward.1} parent=0
    _
  %s12 = ssub.s32 1, %s10
  %s13 = scalar_select 0, %s12, %s10
  $region1: #{simple_dilate_head_forward.1} parent=0
    #allocation2 [shape = 'u8[8192]{0}', space=vmem, size = 0x2000, scoped, tag = 'output window, operand 0, single buffered']
    #allocation3 [shape = 's32[1]{0}', space=sflag, size = 0x4, scoped, tag = 'scoped memory for simple_dilate_head_forward.1']
    %14 = vsyncpa [#allocation3], 0
    // Predicated region
    $region2: #{simple_dilate_head_forward.1} parent=1 // pred_check
      _
    $region3: #{simple_dilate_head_forward.1} parent=1 // pred_check_branch
      %16 = sbr.rel (0) target = $region5
    $region4: #{simple_dilate_head_forward.1} parent=1 // pred_region
      _
    $region5: #{simple_dilate_head_forward.1} parent=1 // pred_fallthru
      _
    // Predicated region
    $region6: #{simple_dilate_head_forward.1} parent=1 // pred_check
      _
    $region7: #{simple_dilate_head_forward.1} parent=1 // pred_check_branch
      %18 = sbr.rel (0) target = $region9
    $region8: #{simple_dilate_head_forward.1} parent=1 // pred_region
      _
    $region9: #{simple_dilate_head_forward.1} parent=1 // pred_fallthru
      _
    // Predicated region
    $region10: #{simple_dilate_head_forward.1} parent=1 // pred_check
      _
    $region11: #{simple_dilate_head_forward.1} parent=1 // pred_check_branch
      %20 = sbr.rel (0) target = $region13
    $region12: #{simple_dilate_head_forward.1} parent=1 // pred_region
      _
    $region13: #{simple_dilate_head_forward.1} parent=1 // pred_fallthru
      _
    // Predicated region
    $region14: #{simple_dilate_head_forward.1} parent=1 // pred_check
      _
    $region15: #{simple_dilate_head_forward.1} parent=1 // pred_check_branch
      %22 = sbr.rel (0) target = $region17
    $region16: #{simple_dilate_head_forward.1} parent=1 // pred_region
      _
    $region17: #{simple_dilate_head_forward.1} parent=1 // pred_fallthru
      _
    // Predicated region
    $region18: #{simple_dilate_head_forward.1} parent=1 // pred_check
      _
    $region19: #{simple_dilate_head_forward.1} parent=1 // pred_check_branch
      %24 = sbr.rel (0) target = $region21
    $region20: #{simple_dilate_head_forward.1} parent=1 // pred_region
      _
    $region21: #{simple_dilate_head_forward.1} parent=1 // pred_fallthru
      _
    // Predicated region
    $region22: #{simple_dilate_head_forward.1} parent=1 // pred_check
      _
    $region23: #{simple_dilate_head_forward.1} parent=1 // pred_check_branch
      %26 = sbr.rel (0) target = $region25
    $region24: #{simple_dilate_head_forward.1} parent=1 // pred_region
      _
    $region25: #{simple_dilate_head_forward.1} parent=1 // pred_fallthru
      _
    %v27 = vld [vmem:[%s1] sm:$0xff]
    %v28 = vld [vmem:[%s1 + $0x8] sm:$0xff]
    %v29 = vld [vmem:[%s1 + $0x10] sm:$0xff]
    %v30 = vld [vmem:[%s1 + $0x18] sm:$0xff]
    %v31 = vld [vmem:[%s0] sm:$0xff]
    %v32 = vld [vmem:[%s0 + $0x8] sm:$0xff]
    %v33 = vld [vmem:[%s0 + $0x10] sm:$0xff]
    %v34 = vld [vmem:[%s0 + $0x18] sm:$0xff]
    %v35 = vld [vmem:[%s0 + $0x20] sm:$0xff]
    %v36 = vld [vmem:[%s0 + $0x28] sm:$0xff]
    %v37 = vld [vmem:[%s0 + $0x30] sm:$0xff]
    %v38 = vld [vmem:[%s0 + $0x38] sm:$0xff]
    %v39 = vld [vmem:[%s0 + $0x40] sm:$0xff]
    %v40 = vld [vmem:[%s0 + $0x48] sm:$0xff]
    %v41 = vld [vmem:[%s0 + $0x50] sm:$0xff]
    %v42 = vld [vmem:[%s0 + $0x58] sm:$0xff]
    %v43 = vld [vmem:[%s0 + $0x60] sm:$0xff]
    %v44 = vld [vmem:[%s0 + $0x68] sm:$0xff]
    %v45 = vld [vmem:[%s0 + $0x70] sm:$0xff]
    %v46 = vld [vmem:[%s0 + $0x78] sm:$0xff]
    %v47 = vld [vmem:[%s0 + $0x80] sm:$0xf]
    %v48 = vld [vmem:[%s0 + $0x88] sm:$0xf]
    %v49 = vld [vmem:[%s0 + $0x90] sm:$0xf]
    %v50 = vld [vmem:[%s0 + $0x98] sm:$0xf]
    %v51 = vld [vmem:[%s2] sm:$0xff]
    %v52 = vld [vmem:[%s2 + $0x8] sm:$0xff]
    %v53 = vld [vmem:[%s2 + $0x10] sm:$0xff]
    %v54 = vld [vmem:[%s2 + $0x18] sm:$0xff]
    %56 = vset.pattern.permute.xlu0 0
    %57 = vperm.xlu0 %56, %v51
    %v58 = vpop.permute.xlu0 %57
    %61 = vset.pattern.permute.xlu0 0
    %62 = vperm.xlu0 %61, %v52
    %v63 = vpop.permute.xlu0 %62
    %66 = vset.pattern.permute.xlu0 0
    %67 = vperm.xlu0 %66, %v53
    %v68 = vpop.permute.xlu0 %67
    %71 = vset.pattern.permute.xlu0 0
    %72 = vperm.xlu0 %71, %v54
    %v73 = vpop.permute.xlu0 %72
    %vm75 = vcmask 293888
    %v77 = vsel %vm75, %v27, 0
    %v80 = vsel %vm75, %v28, 0
    %v83 = vsel %vm75, %v29, 0
    %v86 = vsel %vm75, %v30, 0
    %vm88 = vcmask 1043456
    %v90 = vsel %vm88, %v47, 0
    %v93 = vsel %vm88, %v48, 0
    %v96 = vsel %vm88, %v49, 0
    %v99 = vsel %vm88, %v50, 0
    %101 = vmatprep.subr.mxu0 %v32
    %102 = vmatpush1.msra.mxu0 %v31
    %103 = vmatprep.subr.mxu0 %v36
    %104 = vmatpush1.msra.mxu0 %v35
    %105 = vmatprep.subr.mxu0 %v40
    %106 = vmatpush1.msra.mxu0 %v39
    %107 = vmatprep.subr.mxu0 %v44
    %108 = vmatpush1.msra.mxu0 %v43
    %109 = vmatprep.subr.mxu0 %v93
    %110 = vmatpush1.msra.mxu0 %v90
    %111 = vmatprep.subr.mxu0 0.0
    %112 = vmatpush1.msra.mxu0 0.0
    %113 = vmatprep.subr.mxu0 0.0
    %114 = vmatpush1.msra.mxu0 0.0
    %115 = vmatprep.subr.mxu0 0.0
    %116 = vmatpush1.msra.mxu0 0.0
    %117 = vmatprep.subr.mxu0 0.0
    %118 = vmatpush1.msra.mxu0 0.0
    %119 = vmatprep.subr.mxu0 0.0
    %120 = vmatpush1.msra.mxu0 0.0
    %121 = vmatprep.subr.mxu0 0.0
    %122 = vmatpush1.msra.mxu0 0.0
    %123 = vmatprep.subr.mxu0 0.0
    %124 = vmatpush1.msra.mxu0 0.0
    %125 = vmatprep.subr.mxu0 0.0
    %126 = vmatpush1.msra.mxu0 0.0
    %127 = vmatprep.subr.mxu0 0.0
    %128 = vmatpush1.msra.mxu0 0.0
    %129 = vmatprep.subr.mxu0 0.0
    %130 = vmatpush1.msra.mxu0 0.0
    %131 = vmatprep.subr.mxu0 0.0
    %132 = vmatpush1.msra.mxu0 0.0
    %133 = vmatprep.subr.mxu0 0.0
    %134 = vmatpush1.msra.mxu0 0.0
    %135 = vmatprep.subr.mxu0 0.0
    %136 = vmatpush1.msra.mxu0 0.0
    %137 = vmatprep.subr.mxu0 0.0
    %138 = vmatpush1.msra.mxu0 0.0
    %139 = vmatprep.subr.mxu0 0.0
    %140 = vmatpush1.msra.mxu0 0.0
    %141 = vmatprep.subr.mxu0 0.0
    %142 = vmatpush1.msra.mxu0 0.0
    %143 = vmatprep.subr.mxu0 0.0
    %144 = vmatpush1.msra.mxu0 0.0
    %145 = vmatprep.subr.mxu0 0.0
    %146 = vmatpush1.msra.mxu0 0.0
    %147 = vmatprep.subr.mxu0 0.0
    %148 = vmatpush1.msra.mxu0 0.0
    %149 = vmatprep.subr.mxu0 0.0
    %150 = vmatpush1.msra.mxu0 0.0
    %151 = vmatprep.subr.mxu0 0.0
    %152 = vmatpush1.msra.mxu0 0.0
    %153 = vmatprep.subr.mxu0 0.0
    %154 = vmatpush1.msra.mxu0 0.0
    %155 = vmatprep.subr.mxu0 0.0
    %156 = vmatpush1.msra.mxu0 0.0
    %157 = vmatprep.subr.mxu0 0.0
    %158 = vmatpush1.msra.mxu0 0.0
    %159 = vmatprep.subr.mxu0 0.0
    %160 = vmatpush1.msra.mxu0 0.0
    %161 = vmatprep.subr.mxu0 0.0
    %162 = vmatpush1.msra.mxu0 0.0
    %163 = vmatprep.subr.mxu0 0.0
    %164 = vmatpush1.msra.mxu0 0.0
    %165 = vmatprep.mubr.f32.mxu0 0.0
    %166 = vmatmul.mubr.f32.gmra.mrb[0].mxu0 %v77
    %v167 = vpop.f32.mrb[0].mxu0
    %v168 = vadd.f32 %v58, %v167
    %v169 = vpop.f32.mrb[0].mxu0
    %v170 = vadd.f32 %v58, %v169
    %171 = vmatprep.mubr.f32.mxu0 0.0
    %172 = vmatmul.mubr.f32.gmra.mrb[0].mxu0 %v80
    %v173 = vpop.f32.mrb[0].mxu0
    %v174 = vadd.f32 %v63, %v173
    %v175 = vpop.f32.mrb[0].mxu0
    %v176 = vadd.f32 %v63, %v175
    %177 = vmatprep.mubr.f32.mxu0 0.0
    %178 = vmatmul.mubr.f32.gmra.mrb[0].mxu0 %v83
    %v179 = vpop.f32.mrb[0].mxu0
    %v180 = vadd.f32 %v68, %v179
    %v181 = vpop.f32.mrb[0].mxu0
    %v182 = vadd.f32 %v68, %v181
    %183 = vmatprep.mubr.f32.mxu0 0.0
    %184 = vmatmul.mubr.f32.gmra.mrb[0].mxu0 %v86
    %v185 = vpop.f32.mrb[0].mxu0
    %v186 = vadd.f32 %v73, %v185
    %v187 = vpop.f32.mrb[0].mxu0
    %v188 = vadd.f32 %v73, %v187
    %189 = vdwg.mxu0
    %190 = vmatprep.subr.mxu0 %v34
    %191 = vmatpush1.msra.mxu0 %v33
    %192 = vmatprep.subr.mxu0 %v38
    %193 = vmatpush1.msra.mxu0 %v37
    %194 = vmatprep.subr.mxu0 %v42
    %195 = vmatpush1.msra.mxu0 %v41
    %196 = vmatprep.subr.mxu0 %v46
    %197 = vmatpush1.msra.mxu0 %v45
    %198 = vmatprep.subr.mxu0 %v99
    %199 = vmatpush1.msra.mxu0 %v96
    %200 = vmatprep.subr.mxu0 0.0
    %201 = vmatpush1.msra.mxu0 0.0
    %202 = vmatprep.subr.mxu0 0.0
    %203 = vmatpush1.msra.mxu0 0.0
    %204 = vmatprep.subr.mxu0 0.0
    %205 = vmatpush1.msra.mxu0 0.0
    %206 = vmatprep.subr.mxu0 0.0
    %207 = vmatpush1.msra.mxu0 0.0
    %208 = vmatprep.subr.mxu0 0.0
    %209 = vmatpush1.msra.mxu0 0.0
    %210 = vmatprep.subr.mxu0 0.0
    %211 = vmatpush1.msra.mxu0 0.0
    %212 = vmatprep.subr.mxu0 0.0
    %213 = vmatpush1.msra.mxu0 0.0
    %214 = vmatprep.subr.mxu0 0.0
    %215 = vmatpush1.msra.mxu0 0.0
    %216 = vmatprep.subr.mxu0 0.0
    %217 = vmatpush1.msra.mxu0 0.0
    %218 = vmatprep.subr.mxu0 0.0
    %219 = vmatpush1.msra.mxu0 0.0
    %220 = vmatprep.subr.mxu0 0.0
    %221 = vmatpush1.msra.mxu0 0.0
    %222 = vmatprep.subr.mxu0 0.0
    %223 = vmatpush1.msra.mxu0 0.0
    %224 = vmatprep.subr.mxu0 0.0
    %225 = vmatpush1.msra.mxu0 0.0
    %226 = vmatprep.subr.mxu0 0.0
    %227 = vmatpush1.msra.mxu0 0.0
    %228 = vmatprep.subr.mxu0 0.0
    %229 = vmatpush1.msra.mxu0 0.0
    %230 = vmatprep.subr.mxu0 0.0
    %231 = vmatpush1.msra.mxu0 0.0
    %232 = vmatprep.subr.mxu0 0.0
    %233 = vmatpush1.msra.mxu0 0.0
    %234 = vmatprep.subr.mxu0 0.0
    %235 = vmatpush1.msra.mxu0 0.0
    %236 = vmatprep.subr.mxu0 0.0
    %237 = vmatpush1.msra.mxu0 0.0
    %238 = vmatprep.subr.mxu0 0.0
    %239 = vmatpush1.msra.mxu0 0.0
    %240 = vmatprep.subr.mxu0 0.0
    %241 = vmatpush1.msra.mxu0 0.0
    %242 = vmatprep.subr.mxu0 0.0
    %243 = vmatpush1.msra.mxu0 0.0
    %244 = vmatprep.subr.mxu0 0.0
    %245 = vmatpush1.msra.mxu0 0.0
    %246 = vmatprep.subr.mxu0 0.0
    %247 = vmatpush1.msra.mxu0 0.0
    %248 = vmatprep.subr.mxu0 0.0
    %249 = vmatpush1.msra.mxu0 0.0
    %250 = vmatprep.subr.mxu0 0.0
    %251 = vmatpush1.msra.mxu0 0.0
    %252 = vmatprep.subr.mxu0 0.0
    %253 = vmatpush1.msra.mxu0 0.0
    %254 = vmatprep.mubr.f32.mxu0 0.0
    %255 = vmatmul.mubr.f32.gmra.mrb[0].mxu0 %v77
    %v256 = vpop.f32.mrb[0].mxu0
    %v257 = vadd.f32 %v58, %v256
    %v258 = vpop.f32.mrb[0].mxu0
    %v259 = vadd.f32 %v58, %v258
    %260 = vmatprep.mubr.f32.mxu0 0.0
    %261 = vmatmul.mubr.f32.gmra.mrb[0].mxu0 %v80
    %v262 = vpop.f32.mrb[0].mxu0
    %v263 = vadd.f32 %v63, %v262
    %v264 = vpop.f32.mrb[0].mxu0
    %v265 = vadd.f32 %v63, %v264
    %266 = vmatprep.mubr.f32.mxu0 0.0
    %267 = vmatmul.mubr.f32.gmra.mrb[0].mxu0 %v83
    %v268 = vpop.f32.mrb[0].mxu0
    %v269 = vadd.f32 %v68, %v268
    %v270 = vpop.f32.mrb[0].mxu0
    %v271 = vadd.f32 %v68, %v270
    %272 = vmatprep.mubr.f32.mxu0 0.0
    %273 = vmatmul.mubr.f32.gmra.mrb[0].mxu0 %v86
    %v274 = vpop.f32.mrb[0].mxu0
    %v275 = vadd.f32 %v73, %v274
    %v276 = vpop.f32.mrb[0].mxu0
    %v277 = vadd.f32 %v73, %v276
    %278 = vdwg.mxu0
    %v279 = vmax.f32 %v168, 0.0
    %v280 = vmax.f32 %v170, 0.0
    %v281 = vmax.f32 %v257, 0.0
    %v282 = vmax.f32 %v259, 0.0
    %v283 = vmax.f32 %v174, 0.0
    %v284 = vmax.f32 %v176, 0.0
    %v285 = vmax.f32 %v263, 0.0
    %v286 = vmax.f32 %v265, 0.0
    %v287 = vmax.f32 %v180, 0.0
    %v288 = vmax.f32 %v182, 0.0
    %v289 = vmax.f32 %v269, 0.0
    %v290 = vmax.f32 %v271, 0.0
    %v291 = vmax.f32 %v186, 0.0
    %v292 = vmax.f32 %v188, 0.0
    %v293 = vmax.f32 %v275, 0.0
    %v294 = vmax.f32 %v277, 0.0
    %v295 = vld [vmem:[%s3] sm:$0xf]
    %v296 = vld [vmem:[%s4] sm:$0xf]
    %298 = vset.pattern.permute.xlu0 0
    %299 = vperm.xlu0 %298, %v296
    %v300 = vpop.permute.xlu0 %299
    %vm302 = vcmask 261120
    %v304 = vsel %vm302, %v295, 0
    %306 = vmatprep.subr.mxu0 %v280
    %307 = vmatpush1.msra.mxu0 %v279
    %308 = vmatprep.subr.mxu0 %v284
    %309 = vmatpush1.msra.mxu0 %v283
    %310 = vmatprep.subr.mxu0 %v288
    %311 = vmatpush1.msra.mxu0 %v287
    %312 = vmatprep.subr.mxu0 %v292
    %313 = vmatpush1.msra.mxu0 %v291
    %314 = vmatprep.subr.mxu0 0.0
    %315 = vmatpush1.msra.mxu0 0.0
    %316 = vmatprep.subr.mxu0 0.0
    %317 = vmatpush1.msra.mxu0 0.0
    %318 = vmatprep.subr.mxu0 0.0
    %319 = vmatpush1.msra.mxu0 0.0
    %320 = vmatprep.subr.mxu0 0.0
    %321 = vmatpush1.msra.mxu0 0.0
    %322 = vmatprep.subr.mxu0 0.0
    %323 = vmatpush1.msra.mxu0 0.0
    %324 = vmatprep.subr.mxu0 0.0
    %325 = vmatpush1.msra.mxu0 0.0
    %326 = vmatprep.subr.mxu0 0.0
    %327 = vmatpush1.msra.mxu0 0.0
    %328 = vmatprep.subr.mxu0 0.0
    %329 = vmatpush1.msra.mxu0 0.0
    %330 = vmatprep.subr.mxu0 0.0
    %331 = vmatpush1.msra.mxu0 0.0
    %332 = vmatprep.subr.mxu0 0.0
    %333 = vmatpush1.msra.mxu0 0.0
    %334 = vmatprep.subr.mxu0 0.0
    %335 = vmatpush1.msra.mxu0 0.0
    %336 = vmatprep.subr.mxu0 0.0
    %337 = vmatpush1.msra.mxu0 0.0
    %338 = vmatprep.subr.mxu0 0.0
    %339 = vmatpush1.msra.mxu0 0.0
    %340 = vmatprep.subr.mxu0 0.0
    %341 = vmatpush1.msra.mxu0 0.0
    %342 = vmatprep.subr.mxu0 0.0
    %343 = vmatpush1.msra.mxu0 0.0
    %344 = vmatprep.subr.mxu0 0.0
    %345 = vmatpush1.msra.mxu0 0.0
    %346 = vmatprep.subr.mxu0 0.0
    %347 = vmatpush1.msra.mxu0 0.0
    %348 = vmatprep.subr.mxu0 0.0
    %349 = vmatpush1.msra.mxu0 0.0
    %350 = vmatprep.subr.mxu0 0.0
    %351 = vmatpush1.msra.mxu0 0.0
    %352 = vmatprep.subr.mxu0 0.0
    %353 = vmatpush1.msra.mxu0 0.0
    %354 = vmatprep.subr.mxu0 0.0
    %355 = vmatpush1.msra.mxu0 0.0
    %356 = vmatprep.subr.mxu0 0.0
    %357 = vmatpush1.msra.mxu0 0.0
    %358 = vmatprep.subr.mxu0 0.0
    %359 = vmatpush1.msra.mxu0 0.0
    %360 = vmatprep.subr.mxu0 0.0
    %361 = vmatpush1.msra.mxu0 0.0
    %362 = vmatprep.subr.mxu0 0.0
    %363 = vmatpush1.msra.mxu0 0.0
    %364 = vmatprep.subr.mxu0 0.0
    %365 = vmatpush1.msra.mxu0 0.0
    %366 = vmatprep.subr.mxu0 0.0
    %367 = vmatpush1.msra.mxu0 0.0
    %368 = vmatprep.subr.mxu0 0.0
    %369 = vmatpush1.msra.mxu0 0.0
    %370 = vmatprep.mubr.f32.mxu0 0.0
    %371 = vmatmul.mubr.f32.gmra.mrb[0].mxu0 %v304
    %v372 = vpop.f32.mrb[0].mxu0
    %v373 = vadd.f32 %v300, %v372
    %v374 = vpop.f32.mrb[0].mxu0
    %v375 = vadd.f32 %v300, %v374
    %376 = vdwg.mxu0
    %377 = vmatprep.subr.mxu0 %v282
    %378 = vmatpush1.msra.mxu0 %v281
    %379 = vmatprep.subr.mxu0 %v286
    %380 = vmatpush1.msra.mxu0 %v285
    %381 = vmatprep.subr.mxu0 %v290
    %382 = vmatpush1.msra.mxu0 %v289
    %383 = vmatprep.subr.mxu0 %v294
    %384 = vmatpush1.msra.mxu0 %v293
    %385 = vmatprep.subr.mxu0 0.0
    %386 = vmatpush1.msra.mxu0 0.0
    %387 = vmatprep.subr.mxu0 0.0
    %388 = vmatpush1.msra.mxu0 0.0
    %389 = vmatprep.subr.mxu0 0.0
    %390 = vmatpush1.msra.mxu0 0.0
    %391 = vmatprep.subr.mxu0 0.0
    %392 = vmatpush1.msra.mxu0 0.0
    %393 = vmatprep.subr.mxu0 0.0
    %394 = vmatpush1.msra.mxu0 0.0
    %395 = vmatprep.subr.mxu0 0.0
    %396 = vmatpush1.msra.mxu0 0.0
    %397 = vmatprep.subr.mxu0 0.0
    %398 = vmatpush1.msra.mxu0 0.0
    %399 = vmatprep.subr.mxu0 0.0
    %400 = vmatpush1.msra.mxu0 0.0
    %401 = vmatprep.subr.mxu0 0.0
    %402 = vmatpush1.msra.mxu0 0.0
    %403 = vmatprep.subr.mxu0 0.0
    %404 = vmatpush1.msra.mxu0 0.0
    %405 = vmatprep.subr.mxu0 0.0
    %406 = vmatpush1.msra.mxu0 0.0
    %407 = vmatprep.subr.mxu0 0.0
    %408 = vmatpush1.msra.mxu0 0.0
    %409 = vmatprep.subr.mxu0 0.0
    %410 = vmatpush1.msra.mxu0 0.0
    %411 = vmatprep.subr.mxu0 0.0
    %412 = vmatpush1.msra.mxu0 0.0
    %413 = vmatprep.subr.mxu0 0.0
    %414 = vmatpush1.msra.mxu0 0.0
    %415 = vmatprep.subr.mxu0 0.0
    %416 = vmatpush1.msra.mxu0 0.0
    %417 = vmatprep.subr.mxu0 0.0
    %418 = vmatpush1.msra.mxu0 0.0
    %419 = vmatprep.subr.mxu0 0.0
    %420 = vmatpush1.msra.mxu0 0.0
    %421 = vmatprep.subr.mxu0 0.0
    %422 = vmatpush1.msra.mxu0 0.0
    %423 = vmatprep.subr.mxu0 0.0
    %424 = vmatpush1.msra.mxu0 0.0
    %425 = vmatprep.subr.mxu0 0.0
    %426 = vmatpush1.msra.mxu0 0.0
    %427 = vmatprep.subr.mxu0 0.0
    %428 = vmatpush1.msra.mxu0 0.0
    %429 = vmatprep.subr.mxu0 0.0
    %430 = vmatpush1.msra.mxu0 0.0
    %431 = vmatprep.subr.mxu0 0.0
    %432 = vmatpush1.msra.mxu0 0.0
    %433 = vmatprep.subr.mxu0 0.0
    %434 = vmatpush1.msra.mxu0 0.0
    %435 = vmatprep.subr.mxu0 0.0
    %436 = vmatpush1.msra.mxu0 0.0
    %437 = vmatprep.subr.mxu0 0.0
    %438 = vmatpush1.msra.mxu0 0.0
    %439 = vmatprep.subr.mxu0 0.0
    %440 = vmatpush1.msra.mxu0 0.0
    %441 = vmatprep.mubr.f32.mxu0 0.0
    %442 = vmatmul.mubr.f32.gmra.mrb[0].mxu0 %v304
    %v443 = vpop.f32.mrb[0].mxu0
    %v444 = vadd.f32 %v300, %v443
    %v445 = vpop.f32.mrb[0].mxu0
    %v446 = vadd.f32 %v300, %v445
    %447 = vdwg.mxu0
    %v452 = vcombine.low %v373, %v375
    %v453 = vcombine.low %v444, %v446
    %456 = vst [vmem:[#allocation2] sm:$0xff] %v452
    %457 = vst [vmem:[#allocation2 + $0x8] sm:$0xff] %v453
    %v458 = vld [vmem:[%s5] sm:$0xff]
    %v459 = vld [vmem:[%s5 + $0x8] sm:$0xff]
    %v460 = vld [vmem:[%s5 + $0x10] sm:$0xff]
    %v461 = vld [vmem:[%s5 + $0x18] sm:$0xff]
    %v462 = vld [vmem:[%s5 + $0x20] sm:$0xff]
    %v463 = vld [vmem:[%s5 + $0x28] sm:$0xff]
    %v464 = vld [vmem:[%s5 + $0x30] sm:$0xff]
    %v465 = vld [vmem:[%s5 + $0x38] sm:$0xff]
    %v466 = vld [vmem:[%s5 + $0x40] sm:$0xff]
    %v467 = vld [vmem:[%s5 + $0x48] sm:$0xff]
    %v468 = vld [vmem:[%s5 + $0x50] sm:$0xff]
    %v469 = vld [vmem:[%s5 + $0x58] sm:$0xff]
    %v470 = vld [vmem:[%s5 + $0x60] sm:$0xff]
    %v471 = vld [vmem:[%s5 + $0x68] sm:$0xff]
    %v472 = vld [vmem:[%s5 + $0x70] sm:$0xff]
    %v473 = vld [vmem:[%s5 + $0x78] sm:$0xff]
    %v474 = vld [vmem:[%s5 + $0x80] sm:$0xff]
    %v475 = vld [vmem:[%s5 + $0x88] sm:$0xff]
    %v476 = vld [vmem:[%s5 + $0x90] sm:$0xff]
    %v477 = vld [vmem:[%s5 + $0x98] sm:$0xff]
    %v478 = vld [vmem:[%s5 + $0xa0] sm:$0xff]
    %v479 = vld [vmem:[%s5 + $0xa8] sm:$0xff]
    %v480 = vld [vmem:[%s5 + $0xb0] sm:$0xff]
    %v481 = vld [vmem:[%s5 + $0xb8] sm:$0xff]
    %v482 = vld [vmem:[%s5 + $0xc0] sm:$0xff]
    %v483 = vld [vmem:[%s5 + $0xc8] sm:$0xff]
    %v484 = vld [vmem:[%s5 + $0xd0] sm:$0xff]
    %v485 = vld [vmem:[%s5 + $0xd8] sm:$0xff]
    %v486 = vld [vmem:[%s5 + $0xe0] sm:$0xff]
    %v487 = vld [vmem:[%s5 + $0xe8] sm:$0xff]
    %v488 = vld [vmem:[%s5 + $0xf0] sm:$0xff]
    %v489 = vld [vmem:[%s5 + $0xf8] sm:$0xff]
    %v490 = vld [vmem:[%s5 + $0x100] sm:$0xff]
    %v491 = vld [vmem:[%s5 + $0x108] sm:$0xff]
    %v492 = vld [vmem:[%s5 + $0x110] sm:$0xff]
    %v493 = vld [vmem:[%s5 + $0x118] sm:$0xff]
    %v494 = vld [vmem:[%s5 + $0x120] sm:$0xff]
    %v495 = vld [vmem:[%s5 + $0x128] sm:$0xff]
    %v496 = vld [vmem:[%s5 + $0x130] sm:$0xff]
    %v497 = vld [vmem:[%s5 + $0x138] sm:$0xff]
    %v498 = vld [vmem:[%s5 + $0x140] sm:$0xff]
    %v499 = vld [vmem:[%s5 + $0x148] sm:$0xff]
    %v500 = vld [vmem:[%s5 + $0x150] sm:$0xff]
    %v501 = vld [vmem:[%s5 + $0x158] sm:$0xff]
    %v502 = vld [vmem:[%s5 + $0x160] sm:$0xff]
    %v503 = vld [vmem:[%s5 + $0x168] sm:$0xff]
    %v504 = vld [vmem:[%s5 + $0x170] sm:$0xff]
    %v505 = vld [vmem:[%s5 + $0x178] sm:$0xff]
    %v506 = vld [vmem:[%s5 + $0x180] sm:$0xff]
    %v507 = vld [vmem:[%s5 + $0x188] sm:$0xff]
    %v508 = vld [vmem:[%s5 + $0x190] sm:$0xff]
    %v509 = vld [vmem:[%s5 + $0x198] sm:$0xff]
    %v510 = vld [vmem:[%s5 + $0x1a0] sm:$0xff]
    %v511 = vld [vmem:[%s5 + $0x1a8] sm:$0xff]
    %v512 = vld [vmem:[%s5 + $0x1b0] sm:$0xff]
    %v513 = vld [vmem:[%s5 + $0x1b8] sm:$0xff]
    %v514 = vld [vmem:[%s5 + $0x1c0] sm:$0xff]
    %v515 = vld [vmem:[%s5 + $0x1c8] sm:$0xff]
    %v516 = vld [vmem:[%s5 + $0x1d0] sm:$0xff]
    %v517 = vld [vmem:[%s5 + $0x1d8] sm:$0xff]
    %v518 = vld [vmem:[%s5 + $0x1e0] sm:$0xff]
    %v519 = vld [vmem:[%s5 + $0x1e8] sm:$0xff]
    %v520 = vld [vmem:[%s5 + $0x1f0] sm:$0xff]
    %v521 = vld [vmem:[%s5 + $0x1f8] sm:$0xff]
    %v522 = vld [vmem:[%s5 + $0x200] sm:$0xff]
    %v523 = vld [vmem:[%s5 + $0x208] sm:$0xff]
    %v524 = vld [vmem:[%s5 + $0x210] sm:$0xff]
    %v525 = vld [vmem:[%s5 + $0x218] sm:$0xff]
    %v526 = vld [vmem:[%s5 + $0x220] sm:$0xff]
    %v527 = vld [vmem:[%s5 + $0x228] sm:$0xff]
    %v528 = vld [vmem:[%s5 + $0x230] sm:$0xff]
    %v529 = vld [vmem:[%s5 + $0x238] sm:$0xff]
    %v530 = vld [vmem:[%s5 + $0x240] sm:$0xff]
    %v531 = vld [vmem:[%s5 + $0x248] sm:$0xff]
    %v532 = vld [vmem:[%s5 + $0x250] sm:$0xff]
    %v533 = vld [vmem:[%s5 + $0x258] sm:$0xff]
    %v534 = vld [vmem:[%s5 + $0x260] sm:$0xff]
    %v535 = vld [vmem:[%s5 + $0x268] sm:$0xff]
    %v536 = vld [vmem:[%s5 + $0x270] sm:$0xff]
    %v537 = vld [vmem:[%s5 + $0x278] sm:$0xff]
    %v538 = vld [vmem:[%s5 + $0x280] sm:$0xff]
    %v539 = vld [vmem:[%s5 + $0x288] sm:$0xff]
    %v540 = vld [vmem:[%s5 + $0x290] sm:$0xff]
    %v541 = vld [vmem:[%s5 + $0x298] sm:$0xff]
    %v542 = vld [vmem:[%s5 + $0x2a0] sm:$0xff]
    %v543 = vld [vmem:[%s5 + $0x2a8] sm:$0xff]
    %v544 = vld [vmem:[%s5 + $0x2b0] sm:$0xff]
    %v545 = vld [vmem:[%s5 + $0x2b8] sm:$0xff]
    %v546 = vld [vmem:[%s5 + $0x2c0] sm:$0xff]
    %v547 = vld [vmem:[%s5 + $0x2c8] sm:$0xff]
    %v548 = vld [vmem:[%s5 + $0x2d0] sm:$0xff]
    %v549 = vld [vmem:[%s5 + $0x2d8] sm:$0xff]
    %v550 = vld [vmem:[%s5 + $0x2e0] sm:$0xff]
    %v551 = vld [vmem:[%s5 + $0x2e8] sm:$0xff]
    %v552 = vld [vmem:[%s5 + $0x2f0] sm:$0xff]
    %v553 = vld [vmem:[%s5 + $0x2f8] sm:$0xff]
    %v554 = vld [vmem:[%s5 + $0x300] sm:$0xff]
    %v555 = vld [vmem:[%s5 + $0x308] sm:$0xff]
    %v556 = vld [vmem:[%s5 + $0x310] sm:$0xff]
    %v557 = vld [vmem:[%s5 + $0x318] sm:$0xff]
    %v558 = vld [vmem:[%s5 + $0x320] sm:$0xff]
    %v559 = vld [vmem:[%s5 + $0x328] sm:$0xff]
    %v560 = vld [vmem:[%s5 + $0x330] sm:$0xff]
    %v561 = vld [vmem:[%s5 + $0x338] sm:$0xff]
    %v562 = vld [vmem:[%s5 + $0x340] sm:$0xff]
    %v563 = vld [vmem:[%s5 + $0x348] sm:$0xff]
    %v564 = vld [vmem:[%s5 + $0x350] sm:$0xff]
    %v565 = vld [vmem:[%s5 + $0x358] sm:$0xff]
    %v566 = vld [vmem:[%s5 + $0x360] sm:$0xff]
    %v567 = vld [vmem:[%s5 + $0x368] sm:$0xff]
    %v568 = vld [vmem:[%s5 + $0x370] sm:$0xff]
    %v569 = vld [vmem:[%s5 + $0x378] sm:$0xff]
    %v570 = vld [vmem:[%s5 + $0x380] sm:$0xff]
    %v571 = vld [vmem:[%s5 + $0x388] sm:$0xff]
    %v572 = vld [vmem:[%s5 + $0x390] sm:$0xff]
    %v573 = vld [vmem:[%s5 + $0x398] sm:$0xff]
    %v574 = vld [vmem:[%s5 + $0x3a0] sm:$0xff]
    %v575 = vld [vmem:[%s5 + $0x3a8] sm:$0xff]
    %v576 = vld [vmem:[%s5 + $0x3b0] sm:$0xff]
    %v577 = vld [vmem:[%s5 + $0x3b8] sm:$0xff]
    %v578 = vld [vmem:[%s5 + $0x3c0] sm:$0xff]
    %v579 = vld [vmem:[%s5 + $0x3c8] sm:$0xff]
    %v580 = vld [vmem:[%s5 + $0x3d0] sm:$0xff]
    %v581 = vld [vmem:[%s5 + $0x3d8] sm:$0xff]
    %v582 = vld [vmem:[%s5 + $0x3e0] sm:$0xff]
    %v583 = vld [vmem:[%s5 + $0x3e8] sm:$0xff]
    %v584 = vld [vmem:[%s5 + $0x3f0] sm:$0xff]
    %v585 = vld [vmem:[%s5 + $0x3f8] sm:$0xff]
    %v586 = vld [vmem:[%s5 + $0x400] sm:$0xff]
    %v587 = vld [vmem:[%s5 + $0x408] sm:$0xff]
    %v588 = vld [vmem:[%s5 + $0x410] sm:$0xff]
    %v589 = vld [vmem:[%s5 + $0x418] sm:$0xff]
    %v590 = vld [vmem:[%s5 + $0x420] sm:$0xff]
    %v591 = vld [vmem:[%s5 + $0x428] sm:$0xff]
    %v592 = vld [vmem:[%s5 + $0x430] sm:$0xff]
    %v593 = vld [vmem:[%s5 + $0x438] sm:$0xff]
    %v594 = vld [vmem:[%s5 + $0x440] sm:$0xff]
    %v595 = vld [vmem:[%s5 + $0x448] sm:$0xff]
    %v596 = vld [vmem:[%s5 + $0x450] sm:$0xff]
    %v597 = vld [vmem:[%s5 + $0x458] sm:$0xff]
    %v598 = vld [vmem:[%s5 + $0x460] sm:$0xff]
    %v599 = vld [vmem:[%s5 + $0x468] sm:$0xff]
    %v600 = vld [vmem:[%s5 + $0x470] sm:$0xff]
    %v601 = vld [vmem:[%s5 + $0x478] sm:$0xff]
    %v602 = vld [vmem:[%s5 + $0x480] sm:$0xff]
    %v603 = vld [vmem:[%s5 + $0x488] sm:$0xff]
    %v604 = vld [vmem:[%s5 + $0x490] sm:$0xff]
    %v605 = vld [vmem:[%s5 + $0x498] sm:$0xff]
    %v606 = vld [vmem:[%s5 + $0x4a0] sm:$0xff]
    %v607 = vld [vmem:[%s5 + $0x4a8] sm:$0xff]
    %v608 = vld [vmem:[%s5 + $0x4b0] sm:$0xff]
    %v609 = vld [vmem:[%s5 + $0x4b8] sm:$0xff]
    %v610 = vld [vmem:[%s5 + $0x4c0] sm:$0xff]
    %v611 = vld [vmem:[%s5 + $0x4c8] sm:$0xff]
    %v612 = vld [vmem:[%s5 + $0x4d0] sm:$0xff]
    %v613 = vld [vmem:[%s5 + $0x4d8] sm:$0xff]
    %v614 = vld [vmem:[%s5 + $0x4e0] sm:$0xff]
    %v615 = vld [vmem:[%s5 + $0x4e8] sm:$0xff]
    %v616 = vld [vmem:[%s5 + $0x4f0] sm:$0xff]
    %v617 = vld [vmem:[%s5 + $0x4f8] sm:$0xff]
    %v618 = vld [vmem:[%s5 + $0x500] sm:$0xff]
    %v619 = vld [vmem:[%s5 + $0x508] sm:$0xff]
    %v620 = vld [vmem:[%s5 + $0x510] sm:$0xff]
    %v621 = vld [vmem:[%s5 + $0x518] sm:$0xff]
    %v622 = vld [vmem:[%s5 + $0x520] sm:$0xff]
    %v623 = vld [vmem:[%s5 + $0x528] sm:$0xff]
    %v624 = vld [vmem:[%s5 + $0x530] sm:$0xff]
    %v625 = vld [vmem:[%s5 + $0x538] sm:$0xff]
    %v626 = vld [vmem:[%s5 + $0x540] sm:$0xff]
    %v627 = vld [vmem:[%s5 + $0x548] sm:$0xff]
    %v628 = vld [vmem:[%s5 + $0x550] sm:$0xff]
    %v629 = vld [vmem:[%s5 + $0x558] sm:$0xff]
    %v630 = vld [vmem:[%s5 + $0x560] sm:$0xff]
    %v631 = vld [vmem:[%s5 + $0x568] sm:$0xff]
    %v632 = vld [vmem:[%s5 + $0x570] sm:$0xff]
    %v633 = vld [vmem:[%s5 + $0x578] sm:$0xff]
    %v634 = vld [vmem:[%s5 + $0x580] sm:$0xff]
    %v635 = vld [vmem:[%s5 + $0x588] sm:$0xff]
    %v636 = vld [vmem:[%s5 + $0x590] sm:$0xff]
    %v637 = vld [vmem:[%s5 + $0x598] sm:$0xff]
    %v638 = vld [vmem:[%s5 + $0x5a0] sm:$0xff]
    %v639 = vld [vmem:[%s5 + $0x5a8] sm:$0xff]
    %v640 = vld [vmem:[%s5 + $0x5b0] sm:$0xff]
    %v641 = vld [vmem:[%s5 + $0x5b8] sm:$0xff]
    %v642 = vld [vmem:[%s5 + $0x5c0] sm:$0xff]
    %v643 = vld [vmem:[%s5 + $0x5c8] sm:$0xff]
    %v644 = vld [vmem:[%s5 + $0x5d0] sm:$0xff]
    %v645 = vld [vmem:[%s5 + $0x5d8] sm:$0xff]
    %v646 = vld [vmem:[%s5 + $0x5e0] sm:$0xff]
    %v647 = vld [vmem:[%s5 + $0x5e8] sm:$0xff]
    %v648 = vld [vmem:[%s5 + $0x5f0] sm:$0xff]
    %v649 = vld [vmem:[%s5 + $0x5f8] sm:$0xff]
    %v650 = vld [vmem:[%s5 + $0x600] sm:$0xff]
    %v651 = vld [vmem:[%s5 + $0x608] sm:$0xff]
    %v652 = vld [vmem:[%s5 + $0x610] sm:$0xff]
    %v653 = vld [vmem:[%s5 + $0x618] sm:$0xff]
    %v654 = vld [vmem:[%s5 + $0x620] sm:$0xff]
    %v655 = vld [vmem:[%s5 + $0x628] sm:$0xff]
    %v656 = vld [vmem:[%s5 + $0x630] sm:$0xff]
    %v657 = vld [vmem:[%s5 + $0x638] sm:$0xff]
    %v658 = vld [vmem:[%s5 + $0x640] sm:$0xff]
    %v659 = vld [vmem:[%s5 + $0x648] sm:$0xff]
    %v660 = vld [vmem:[%s5 + $0x650] sm:$0xff]
    %v661 = vld [vmem:[%s5 + $0x658] sm:$0xff]
    %v662 = vld [vmem:[%s5 + $0x660] sm:$0xff]
    %v663 = vld [vmem:[%s5 + $0x668] sm:$0xff]
    %v664 = vld [vmem:[%s5 + $0x670] sm:$0xff]
    %v665 = vld [vmem:[%s5 + $0x678] sm:$0xff]
    %v666 = vld [vmem:[%s5 + $0x680] sm:$0xff]
    %v667 = vld [vmem:[%s5 + $0x688] sm:$0xff]
    %v668 = vld [vmem:[%s5 + $0x690] sm:$0xff]
    %v669 = vld [vmem:[%s5 + $0x698] sm:$0xff]
    %v670 = vld [vmem:[%s5 + $0x6a0] sm:$0xff]
    %v671 = vld [vmem:[%s5 + $0x6a8] sm:$0xff]
    %v672 = vld [vmem:[%s5 + $0x6b0] sm:$0xff]
    %v673 = vld [vmem:[%s5 + $0x6b8] sm:$0xff]
    %v674 = vld [vmem:[%s5 + $0x6c0] sm:$0xff]
    %v675 = vld [vmem:[%s5 + $0x6c8] sm:$0xff]
    %v676 = vld [vmem:[%s5 + $0x6d0] sm:$0xff]
    %v677 = vld [vmem:[%s5 + $0x6d8] sm:$0xff]
    %v678 = vld [vmem:[%s5 + $0x6e0] sm:$0xff]
    %v679 = vld [vmem:[%s5 + $0x6e8] sm:$0xff]
    %v680 = vld [vmem:[%s5 + $0x6f0] sm:$0xff]
    %v681 = vld [vmem:[%s5 + $0x6f8] sm:$0xff]
    %v682 = vld [vmem:[%s5 + $0x700] sm:$0xff]
    %v683 = vld [vmem:[%s5 + $0x708] sm:$0xff]
    %v684 = vld [vmem:[%s5 + $0x710] sm:$0xff]
    %v685 = vld [vmem:[%s5 + $0x718] sm:$0xff]
    %v686 = vld [vmem:[%s5 + $0x720] sm:$0xff]
    %v687 = vld [vmem:[%s5 + $0x728] sm:$0xff]
    %v688 = vld [vmem:[%s5 + $0x730] sm:$0xff]
    %v689 = vld [vmem:[%s5 + $0x738] sm:$0xff]
    %v690 = vld [vmem:[%s5 + $0x740] sm:$0xff]
    %v691 = vld [vmem:[%s5 + $0x748] sm:$0xff]
    %v692 = vld [vmem:[%s5 + $0x750] sm:$0xff]
    %v693 = vld [vmem:[%s5 + $0x758] sm:$0xff]
    %v694 = vld [vmem:[%s5 + $0x760] sm:$0xff]
    %v695 = vld [vmem:[%s5 + $0x768] sm:$0xff]
    %v696 = vld [vmem:[%s5 + $0x770] sm:$0xff]
    %v697 = vld [vmem:[%s5 + $0x778] sm:$0xff]
    %v698 = vld [vmem:[%s5 + $0x780] sm:$0xff]
    %v699 = vld [vmem:[%s5 + $0x788] sm:$0xff]
    %v700 = vld [vmem:[%s5 + $0x790] sm:$0xff]
    %v701 = vld [vmem:[%s5 + $0x798] sm:$0xff]
    %v702 = vld [vmem:[%s5 + $0x7a0] sm:$0xff]
    %v703 = vld [vmem:[%s5 + $0x7a8] sm:$0xff]
    %v704 = vld [vmem:[%s5 + $0x7b0] sm:$0xff]
    %v705 = vld [vmem:[%s5 + $0x7b8] sm:$0xff]
    %v706 = vld [vmem:[%s5 + $0x7c0] sm:$0xff]
    %v707 = vld [vmem:[%s5 + $0x7c8] sm:$0xff]
    %v708 = vld [vmem:[%s5 + $0x7d0] sm:$0xff]
    %v709 = vld [vmem:[%s5 + $0x7d8] sm:$0xff]
    %v710 = vld [vmem:[%s5 + $0x7e0] sm:$0xff]
    %v711 = vld [vmem:[%s5 + $0x7e8] sm:$0xff]
    %v712 = vld [vmem:[%s5 + $0x7f0] sm:$0xff]
    %v713 = vld [vmem:[%s5 + $0x7f8] sm:$0xff]
    %714 = vmatprep.subr.mxu0 %v459
    %715 = vmatpush1.msra.mxu0 %v458
    %716 = vmatprep.subr.mxu0 %v467
    %717 = vmatpush1.msra.mxu0 %v466
    %718 = vmatprep.subr.mxu0 %v475
    %719 = vmatpush1.msra.mxu0 %v474
    %720 = vmatprep.subr.mxu0 %v483
    %721 = vmatpush1.msra.mxu0 %v482
    %722 = vmatprep.subr.mxu0 %v491
    %723 = vmatpush1.msra.mxu0 %v490
    %724 = vmatprep.subr.mxu0 %v499
    %725 = vmatpush1.msra.mxu0 %v498
    %726 = vmatprep.subr.mxu0 %v507
    %727 = vmatpush1.msra.mxu0 %v506
    %728 = vmatprep.subr.mxu0 %v515
    %729 = vmatpush1.msra.mxu0 %v514
    %730 = vmatprep.subr.mxu0 %v523
    %731 = vmatpush1.msra.mxu0 %v522
    %732 = vmatprep.subr.mxu0 %v531
    %733 = vmatpush1.msra.mxu0 %v530
    %734 = vmatprep.subr.mxu0 %v539
    %735 = vmatpush1.msra.mxu0 %v538
    %736 = vmatprep.subr.mxu0 %v547
    %737 = vmatpush1.msra.mxu0 %v546
    %738 = vmatprep.subr.mxu0 %v555
    %739 = vmatpush1.msra.mxu0 %v554
    %740 = vmatprep.subr.mxu0 %v563
    %741 = vmatpush1.msra.mxu0 %v562
    %742 = vmatprep.subr.mxu0 %v571
    %743 = vmatpush1.msra.mxu0 %v570
    %744 = vmatprep.subr.mxu0 %v579
    %745 = vmatpush1.msra.mxu0 %v578
    %746 = vmatprep.subr.mxu0 %v587
    %747 = vmatpush1.msra.mxu0 %v586
    %748 = vmatprep.subr.mxu0 %v595
    %749 = vmatpush1.msra.mxu0 %v594
    %750 = vmatprep.subr.mxu0 %v603
    %751 = vmatpush1.msra.mxu0 %v602
    %752 = vmatprep.subr.mxu0 %v611
    %753 = vmatpush1.msra.mxu0 %v610
    %754 = vmatprep.subr.mxu0 %v619
    %755 = vmatpush1.msra.mxu0 %v618
    %756 = vmatprep.subr.mxu0 %v627
    %757 = vmatpush1.msra.mxu0 %v626
    %758 = vmatprep.subr.mxu0 %v635
    %759 = vmatpush1.msra.mxu0 %v634
    %760 = vmatprep.subr.mxu0 %v643
    %761 = vmatpush1.msra.mxu0 %v642
    %762 = vmatprep.subr.mxu0 %v651
    %763 = vmatpush1.msra.mxu0 %v650
    %764 = vmatprep.subr.mxu0 %v659
    %765 = vmatpush1.msra.mxu0 %v658
    %766 = vmatprep.subr.mxu0 %v667
    %767 = vmatpush1.msra.mxu0 %v666
    %768 = vmatprep.subr.mxu0 %v675
    %769 = vmatpush1.msra.mxu0 %v674
    %770 = vmatprep.subr.mxu0 %v683
    %771 = vmatpush1.msra.mxu0 %v682
    %772 = vmatprep.subr.mxu0 %v691
    %773 = vmatpush1.msra.mxu0 %v690
    %774 = vmatprep.subr.mxu0 %v699
    %775 = vmatpush1.msra.mxu0 %v698
    %776 = vmatprep.subr.mxu0 %v707
    %777 = vmatpush1.msra.mxu0 %v706
    %778 = vmatprep.mubr.f32.mxu0 %v375
    %779 = vmatmul.mubr.f32.gmra.mrb[0].mxu0 %v373
    %v780 = vpop.f32.mrb[0].mxu0
    %v781 = vadd.f32 0.0, %v780
    %v782 = vpop.f32.mrb[0].mxu0
    %v783 = vadd.f32 0.0, %v782
    %784 = vdwg.mxu0
    %785 = vmatprep.subr.mxu0 %v461
    %786 = vmatpush1.msra.mxu0 %v460
    %787 = vmatprep.subr.mxu0 %v469
    %788 = vmatpush1.msra.mxu0 %v468
    %789 = vmatprep.subr.mxu0 %v477
    %790 = vmatpush1.msra.mxu0 %v476
    %791 = vmatprep.subr.mxu0 %v485
    %792 = vmatpush1.msra.mxu0 %v484
    %793 = vmatprep.subr.mxu0 %v493
    %794 = vmatpush1.msra.mxu0 %v492
    %795 = vmatprep.subr.mxu0 %v501
    %796 = vmatpush1.msra.mxu0 %v500
    %797 = vmatprep.subr.mxu0 %v509
    %798 = vmatpush1.msra.mxu0 %v508
    %799 = vmatprep.subr.mxu0 %v517
    %800 = vmatpush1.msra.mxu0 %v516
    %801 = vmatprep.subr.mxu0 %v525
    %802 = vmatpush1.msra.mxu0 %v524
    %803 = vmatprep.subr.mxu0 %v533
    %804 = vmatpush1.msra.mxu0 %v532
    %805 = vmatprep.subr.mxu0 %v541
    %806 = vmatpush1.msra.mxu0 %v540
    %807 = vmatprep.subr.mxu0 %v549
    %808 = vmatpush1.msra.mxu0 %v548
    %809 = vmatprep.subr.mxu0 %v557
    %810 = vmatpush1.msra.mxu0 %v556
    %811 = vmatprep.subr.mxu0 %v565
    %812 = vmatpush1.msra.mxu0 %v564
    %813 = vmatprep.subr.mxu0 %v573
    %814 = vmatpush1.msra.mxu0 %v572
    %815 = vmatprep.subr.mxu0 %v581
    %816 = vmatpush1.msra.mxu0 %v580
    %817 = vmatprep.subr.mxu0 %v589
    %818 = vmatpush1.msra.mxu0 %v588
    %819 = vmatprep.subr.mxu0 %v597
    %820 = vmatpush1.msra.mxu0 %v596
    %821 = vmatprep.subr.mxu0 %v605
    %822 = vmatpush1.msra.mxu0 %v604
    %823 = vmatprep.subr.mxu0 %v613
    %824 = vmatpush1.msra.mxu0 %v612
    %825 = vmatprep.subr.mxu0 %v621
    %826 = vmatpush1.msra.mxu0 %v620
    %827 = vmatprep.subr.mxu0 %v629
    %828 = vmatpush1.msra.mxu0 %v628
    %829 = vmatprep.subr.mxu0 %v637
    %830 = vmatpush1.msra.mxu0 %v636
    %831 = vmatprep.subr.mxu0 %v645
    %832 = vmatpush1.msra.mxu0 %v644
    %833 = vmatprep.subr.mxu0 %v653
    %834 = vmatpush1.msra.mxu0 %v652
    %835 = vmatprep.subr.mxu0 %v661
    %836 = vmatpush1.msra.mxu0 %v660
    %837 = vmatprep.subr.mxu0 %v669
    %838 = vmatpush1.msra.mxu0 %v668
    %839 = vmatprep.subr.mxu0 %v677
    %840 = vmatpush1.msra.mxu0 %v676
    %841 = vmatprep.subr.mxu0 %v685
    %842 = vmatpush1.msra.mxu0 %v684
    %843 = vmatprep.subr.mxu0 %v693
    %844 = vmatpush1.msra.mxu0 %v692
    %845 = vmatprep.subr.mxu0 %v701
    %846 = vmatpush1.msra.mxu0 %v700
    %847 = vmatprep.subr.mxu0 %v709
    %848 = vmatpush1.msra.mxu0 %v708
    %849 = vmatprep.mubr.f32.mxu0 %v375
    %850 = vmatmul.mubr.f32.gmra.mrb[0].mxu0 %v373
    %v851 = vpop.f32.mrb[0].mxu0
    %v852 = vadd.f32 0.0, %v851
    %v853 = vpop.f32.mrb[0].mxu0
    %v854 = vadd.f32 0.0, %v853
    %855 = vdwg.mxu0
    %856 = vmatprep.subr.mxu0 %v463
    %857 = vmatpush1.msra.mxu0 %v462
    %858 = vmatprep.subr.mxu0 %v471
    %859 = vmatpush1.msra.mxu0 %v470
    %860 = vmatprep.subr.mxu0 %v479
    %861 = vmatpush1.msra.mxu0 %v478
    %862 = vmatprep.subr.mxu0 %v487
    %863 = vmatpush1.msra.mxu0 %v486
    %864 = vmatprep.subr.mxu0 %v495
    %865 = vmatpush1.msra.mxu0 %v494
    %866 = vmatprep.subr.mxu0 %v503
    %867 = vmatpush1.msra.mxu0 %v502
    %868 = vmatprep.subr.mxu0 %v511
    %869 = vmatpush1.msra.mxu0 %v510
    %870 = vmatprep.subr.mxu0 %v519
    %871 = vmatpush1.msra.mxu0 %v518
    %872 = vmatprep.subr.mxu0 %v527
    %873 = vmatpush1.msra.mxu0 %v526
    %874 = vmatprep.subr.mxu0 %v535
    %875 = vmatpush1.msra.mxu0 %v534
    %876 = vmatprep.subr.mxu0 %v543
    %877 = vmatpush1.msra.mxu0 %v542
    %878 = vmatprep.subr.mxu0 %v551
    %879 = vmatpush1.msra.mxu0 %v550
    %880 = vmatprep.subr.mxu0 %v559
    %881 = vmatpush1.msra.mxu0 %v558
    %882 = vmatprep.subr.mxu0 %v567
    %883 = vmatpush1.msra.mxu0 %v566
    %884 = vmatprep.subr.mxu0 %v575
    %885 = vmatpush1.msra.mxu0 %v574
    %886 = vmatprep.subr.mxu0 %v583
    %887 = vmatpush1.msra.mxu0 %v582
    %888 = vmatprep.subr.mxu0 %v591
    %889 = vmatpush1.msra.mxu0 %v590
    %890 = vmatprep.subr.mxu0 %v599
    %891 = vmatpush1.msra.mxu0 %v598
    %892 = vmatprep.subr.mxu0 %v607
    %893 = vmatpush1.msra.mxu0 %v606
    %894 = vmatprep.subr.mxu0 %v615
    %895 = vmatpush1.msra.mxu0 %v614
    %896 = vmatprep.subr.mxu0 %v623
    %897 = vmatpush1.msra.mxu0 %v622
    %898 = vmatprep.subr.mxu0 %v631
    %899 = vmatpush1.msra.mxu0 %v630
    %900 = vmatprep.subr.mxu0 %v639
    %901 = vmatpush1.msra.mxu0 %v638
    %902 = vmatprep.subr.mxu0 %v647
    %903 = vmatpush1.msra.mxu0 %v646
    %904 = vmatprep.subr.mxu0 %v655
    %905 = vmatpush1.msra.mxu0 %v654
    %906 = vmatprep.subr.mxu0 %v663
    %907 = vmatpush1.msra.mxu0 %v662
    %908 = vmatprep.subr.mxu0 %v671
    %909 = vmatpush1.msra.mxu0 %v670
    %910 = vmatprep.subr.mxu0 %v679
    %911 = vmatpush1.msra.mxu0 %v678
    %912 = vmatprep.subr.mxu0 %v687
    %913 = vmatpush1.msra.mxu0 %v686
    %914 = vmatprep.subr.mxu0 %v695
    %915 = vmatpush1.msra.mxu0 %v694
    %916 = vmatprep.subr.mxu0 %v703
    %917 = vmatpush1.msra.mxu0 %v702
    %918 = vmatprep.subr.mxu0 %v711
    %919 = vmatpush1.msra.mxu0 %v710
    %920 = vmatprep.mubr.f32.mxu0 %v375
    %921 = vmatmul.mubr.f32.gmra.mrb[0].mxu0 %v373
    %v922 = vpop.f32.mrb[0].mxu0
    %v923 = vadd.f32 0.0, %v922
    %v924 = vpop.f32.mrb[0].mxu0
    %v925 = vadd.f32 0.0, %v924
    %926 = vdwg.mxu0
    %927 = vmatprep.subr.mxu0 %v465
    %928 = vmatpush1.msra.mxu0 %v464
    %929 = vmatprep.subr.mxu0 %v473
    %930 = vmatpush1.msra.mxu0 %v472
    %931 = vmatprep.subr.mxu0 %v481
    %932 = vmatpush1.msra.mxu0 %v480
    %933 = vmatprep.subr.mxu0 %v489
    %934 = vmatpush1.msra.mxu0 %v488
    %935 = vmatprep.subr.mxu0 %v497
    %936 = vmatpush1.msra.mxu0 %v496
    %937 = vmatprep.subr.mxu0 %v505
    %938 = vmatpush1.msra.mxu0 %v504
    %939 = vmatprep.subr.mxu0 %v513
    %940 = vmatpush1.msra.mxu0 %v512
    %941 = vmatprep.subr.mxu0 %v521
    %942 = vmatpush1.msra.mxu0 %v520
    %943 = vmatprep.subr.mxu0 %v529
    %944 = vmatpush1.msra.mxu0 %v528
    %945 = vmatprep.subr.mxu0 %v537
    %946 = vmatpush1.msra.mxu0 %v536
    %947 = vmatprep.subr.mxu0 %v545
    %948 = vmatpush1.msra.mxu0 %v544
    %949 = vmatprep.subr.mxu0 %v553
    %950 = vmatpush1.msra.mxu0 %v552
    %951 = vmatprep.subr.mxu0 %v561
    %952 = vmatpush1.msra.mxu0 %v560
    %953 = vmatprep.subr.mxu0 %v569
    %954 = vmatpush1.msra.mxu0 %v568
    %955 = vmatprep.subr.mxu0 %v577
    %956 = vmatpush1.msra.mxu0 %v576
    %957 = vmatprep.subr.mxu0 %v585
    %958 = vmatpush1.msra.mxu0 %v584
    %959 = vmatprep.subr.mxu0 %v593
    %960 = vmatpush1.msra.mxu0 %v592
    %961 = vmatprep.subr.mxu0 %v601
    %962 = vmatpush1.msra.mxu0 %v600
    %963 = vmatprep.subr.mxu0 %v609
    %964 = vmatpush1.msra.mxu0 %v608
    %965 = vmatprep.subr.mxu0 %v617
    %966 = vmatpush1.msra.mxu0 %v616
    %967 = vmatprep.subr.mxu0 %v625
    %968 = vmatpush1.msra.mxu0 %v624
    %969 = vmatprep.subr.mxu0 %v633
    %970 = vmatpush1.msra.mxu0 %v632
    %971 = vmatprep.subr.mxu0 %v641
    %972 = vmatpush1.msra.mxu0 %v640
    %973 = vmatprep.subr.mxu0 %v649
    %974 = vmatpush1.msra.mxu0 %v648
    %975 = vmatprep.subr.mxu0 %v657
    %976 = vmatpush1.msra.mxu0 %v656
    %977 = vmatprep.subr.mxu0 %v665
    %978 = vmatpush1.msra.mxu0 %v664
    %979 = vmatprep.subr.mxu0 %v673
    %980 = vmatpush1.msra.mxu0 %v672
    %981 = vmatprep.subr.mxu0 %v681
    %982 = vmatpush1.msra.mxu0 %v680
    %983 = vmatprep.subr.mxu0 %v689
    %984 = vmatpush1.msra.mxu0 %v688
    %985 = vmatprep.subr.mxu0 %v697
    %986 = vmatpush1.msra.mxu0 %v696
    %987 = vmatprep.subr.mxu0 %v705
    %988 = vmatpush1.msra.mxu0 %v704
    %989 = vmatprep.subr.mxu0 %v713
    %990 = vmatpush1.msra.mxu0 %v712
    %991 = vmatprep.mubr.f32.mxu0 %v375
    %992 = vmatmul.mubr.f32.gmra.mrb[0].mxu0 %v373
    %v993 = vpop.f32.mrb[0].mxu0
    %v994 = vadd.f32 0.0, %v993
    %v995 = vpop.f32.mrb[0].mxu0
    %v996 = vadd.f32 0.0, %v995
    %997 = vdwg.mxu0
    %v998 = vxor.u32 %v781, 2147483648
    %v999 = vxor.u32 %v783, 2147483648
    %v1000 = vxor.u32 %v852, 2147483648
    %v1001 = vxor.u32 %v854, 2147483648
    %v1002 = vxor.u32 %v923, 2147483648
    %v1003 = vxor.u32 %v925, 2147483648
    %v1004 = vxor.u32 %v994, 2147483648
    %v1005 = vxor.u32 %v996, 2147483648
    %v1006 = vmul.f32 %v998, 1.442695
    %v1007 = vpow.pop %v1006
    %v1008 = vmul.f32 %v999, 1.442695
    %v1009 = vpow.pop %v1008
    %v1010 = vmul.f32 %v1000, 1.442695
    %v1011 = vpow.pop %v1010
    %v1012 = vmul.f32 %v1001, 1.442695
    %v1013 = vpow.pop %v1012
    %v1014 = vmul.f32 %v1002, 1.442695
    %v1015 = vpow.pop %v1014
    %v1016 = vmul.f32 %v1003, 1.442695
    %v1017 = vpow.pop %v1016
    %v1018 = vmul.f32 %v1004, 1.442695
    %v1019 = vpow.pop %v1018
    %v1020 = vmul.f32 %v1005, 1.442695
    %v1021 = vpow.pop %v1020
    %v1022 = vadd.f32 %v1007, 1.0
    %v1023 = vadd.f32 %v1009, 1.0
    %v1024 = vadd.f32 %v1011, 1.0
    %v1025 = vadd.f32 %v1013, 1.0
    %v1026 = vadd.f32 %v1015, 1.0
    %v1027 = vadd.f32 %v1017, 1.0
    %v1028 = vadd.f32 %v1019, 1.0
    %v1029 = vadd.f32 %v1021, 1.0
    %v1030 = vrcp.pop %v1022
    %v1031 = vmul.f32 1.0, %v1030
    %v1032 = vrcp.pop %v1023
    %v1033 = vmul.f32 1.0, %v1032
    %v1034 = vrcp.pop %v1024
    %v1035 = vmul.f32 1.0, %v1034
    %v1036 = vrcp.pop %v1025
    %v1037 = vmul.f32 1.0, %v1036
    %v1038 = vrcp.pop %v1026
    %v1039 = vmul.f32 1.0, %v1038
    %v1040 = vrcp.pop %v1027
    %v1041 = vmul.f32 1.0, %v1040
    %v1042 = vrcp.pop %v1028
    %v1043 = vmul.f32 1.0, %v1042
    %v1044 = vrcp.pop %v1029
    %v1045 = vmul.f32 1.0, %v1044
    %v1054 = vcombine.low %v1031, %v1033
    %v1055 = vcombine.low %v1035, %v1037
    %v1056 = vcombine.low %v1039, %v1041
    %v1057 = vcombine.low %v1043, %v1045
    %v1059 = vunpack.c.l.s4 1966171168
    %v1060 = vunpack.c.0.s8 %v1059
    %v1061 = vlaneseq
    %v1062 = vshrl.u32 %v1061, 7
    %v1063 = vsub.s32 %v1060, %v1062
    %v1064 = vrot.slane %v1054, %v1063
    %v1066 = vunpack.c.l.s4 1966171168
    %v1067 = vunpack.c.0.s8 %v1066
    %v1068 = vlaneseq
    %v1069 = vshrl.u32 %v1068, 7
    %v1070 = vsub.s32 %v1067, %v1069
    %v1071 = vrot.slane %v1055, %v1070
    %v1073 = vunpack.c.l.s4 1966171168
    %v1074 = vunpack.c.0.s8 %v1073
    %v1075 = vlaneseq
    %v1076 = vshrl.u32 %v1075, 7
    %v1077 = vsub.s32 %v1074, %v1076
    %v1078 = vrot.slane %v1056, %v1077
    %v1080 = vunpack.c.l.s4 1966171168
    %v1081 = vunpack.c.0.s8 %v1080
    %v1082 = vlaneseq
    %v1083 = vshrl.u32 %v1082, 7
    %v1084 = vsub.s32 %v1081, %v1083
    %v1085 = vrot.slane %v1057, %v1084
    %v1086 = vcombine.low %v1064, %v1071
    %v1087 = vcombine.low %v1078, %v1085
    %v1089 = vunpack.c.l.s4 1966171168
    %v1090 = vunpack.c.0.s8 %v1089
    %v1091 = vlaneseq
    %v1092 = vshrl.u32 %v1091, 7
    %v1093 = vsub.s32 %v1090, %v1092
    %v1094 = vrot.slane %v1086, %v1093
    %v1096 = vunpack.c.l.s4 1966171168
    %v1097 = vunpack.c.0.s8 %v1096
    %v1098 = vlaneseq
    %v1099 = vshrl.u32 %v1098, 7
    %v1100 = vsub.s32 %v1097, %v1099
    %v1101 = vrot.slane %v1087, %v1100
    %v1102 = vcombine.low %v1094, %v1101
    %1104 = vst [vmem:[%s7] sm:$0xff] %v1102
    %vm1105 = vcmp.gt.f32.partialorder %v781, 1.0
    %vm1106 = vcmp.gt.f32.partialorder %v783, 1.0
    %vm1107 = vcmp.gt.f32.partialorder %v852, 1.0
    %vm1108 = vcmp.gt.f32.partialorder %v854, 1.0
    %vm1109 = vcmp.gt.f32.partialorder %v923, 1.0
    %vm1110 = vcmp.gt.f32.partialorder %v925, 1.0
    %vm1111 = vcmp.gt.f32.partialorder %v994, 1.0
    %vm1112 = vcmp.gt.f32.partialorder %v996, 1.0
    %v1113 = vsel %vm1105, 1, 0
    %v1114 = vsel %vm1106, 1, 0
    %v1115 = vsel %vm1107, 1, 0
    %v1116 = vsel %vm1108, 1, 0
    %v1117 = vsel %vm1109, 1, 0
    %v1118 = vsel %vm1110, 1, 0
    %v1119 = vsel %vm1111, 1, 0
    %v1120 = vsel %vm1112, 1, 0
    %v1121 = vrot.slane %v1113, 3
    %v1122 = vrot.slane %v1114, 3
    %v1123 = vrot.slane %v1115, 3
    %v1124 = vrot.slane %v1116, 3
    %v1125 = vrot.slane %v1117, 3
    %v1126 = vrot.slane %v1118, 3
    %v1127 = vrot.slane %v1119, 3
    %v1128 = vrot.slane %v1120, 3
    %vm1129 = vcmp.ne.s32.totalorder %v1121, 0
    %vm1130 = vcmp.ne.s32.totalorder %v1122, 0
    %vm1131 = vcmp.ne.s32.totalorder %v1123, 0
    %vm1132 = vcmp.ne.s32.totalorder %v1124, 0
    %vm1133 = vcmp.ne.s32.totalorder %v1125, 0
    %vm1134 = vcmp.ne.s32.totalorder %v1126, 0
    %vm1135 = vcmp.ne.s32.totalorder %v1127, 0
    %vm1136 = vcmp.ne.s32.totalorder %v1128, 0
    %vm1137 = vmand %vm1105, %vm1129
    %vm1138 = vmand %vm1106, %vm1130
    %vm1139 = vmand %vm1107, %vm1131
    %vm1140 = vmand %vm1108, %vm1132
    %vm1141 = vmand %vm1109, %vm1133
    %vm1142 = vmand %vm1110, %vm1134
    %vm1143 = vmand %vm1111, %vm1135
    %vm1144 = vmand %vm1112, %vm1136
    %v1145 = vsel %vm1137, 1, 0
    %v1146 = vsel %vm1138, 1, 0
    %v1147 = vsel %vm1139, 1, 0
    %v1148 = vsel %vm1140, 1, 0
    %v1149 = vsel %vm1141, 1, 0
    %v1150 = vsel %vm1142, 1, 0
    %v1151 = vsel %vm1143, 1, 0
    %v1152 = vsel %vm1144, 1, 0
    %v1153 = vpack.c.b16 %v1145, %v1145
    %v1154 = vpack.c.b8 %v1153, %v1153
    %v1155 = vpack.c.b16 %v1146, %v1146
    %v1156 = vpack.c.b8 %v1155, %v1155
    %v1157 = vpack.c.b16 %v1147, %v1147
    %v1158 = vpack.c.b8 %v1157, %v1157
    %v1159 = vpack.c.b16 %v1148, %v1148
    %v1160 = vpack.c.b8 %v1159, %v1159
    %v1161 = vpack.c.b16 %v1149, %v1149
    %v1162 = vpack.c.b8 %v1161, %v1161
    %v1163 = vpack.c.b16 %v1150, %v1150
    %v1164 = vpack.c.b8 %v1163, %v1163
    %v1165 = vpack.c.b16 %v1151, %v1151
    %v1166 = vpack.c.b8 %v1165, %v1165
    %v1167 = vpack.c.b16 %v1152, %v1152
    %v1168 = vpack.c.b8 %v1167, %v1167
    %v1169 = vcombine.low %v1154, %v1156
    %v1170 = vcombine.low %v1158, %v1160
    %v1171 = vcombine.low %v1162, %v1164
    %v1172 = vcombine.low %v1166, %v1168
    %v1174 = vunpack.c.l.s4 1966171168
    %v1175 = vunpack.c.0.s8 %v1174
    %v1176 = vlaneseq
    %v1177 = vshrl.u32 %v1176, 7
    %v1178 = vsub.s32 %v1175, %v1177
    %v1179 = vrot.slane %v1169, %v1178
    %v1181 = vunpack.c.l.s4 1966171168
    %v1182 = vunpack.c.0.s8 %v1181
    %v1183 = vlaneseq
    %v1184 = vshrl.u32 %v1183, 7
    %v1185 = vsub.s32 %v1182, %v1184
    %v1186 = vrot.slane %v1170, %v1185
    %v1188 = vunpack.c.l.s4 1966171168
    %v1189 = vunpack.c.0.s8 %v1188
    %v1190 = vlaneseq
    %v1191 = vshrl.u32 %v1190, 7
    %v1192 = vsub.s32 %v1189, %v1191
    %v1193 = vrot.slane %v1171, %v1192
    %v1195 = vunpack.c.l.s4 1966171168
    %v1196 = vunpack.c.0.s8 %v1195
    %v1197 = vlaneseq
    %v1198 = vshrl.u32 %v1197, 7
    %v1199 = vsub.s32 %v1196, %v1198
    %v1200 = vrot.slane %v1172, %v1199
    %v1201 = vcombine.low %v1179, %v1186
    %v1202 = vcombine.low %v1193, %v1200
    %v1204 = vunpack.c.l.s4 1966171168
    %v1205 = vunpack.c.0.s8 %v1204
    %v1206 = vlaneseq
    %v1207 = vshrl.u32 %v1206, 7
    %v1208 = vsub.s32 %v1205, %v1207
    %v1209 = vrot.slane %v1201, %v1208
    %v1211 = vunpack.c.l.s4 1966171168
    %v1212 = vunpack.c.0.s8 %v1211
    %v1213 = vlaneseq
    %v1214 = vshrl.u32 %v1213, 7
    %v1215 = vsub.s32 %v1212, %v1214
    %v1216 = vrot.slane %v1202, %v1215
    %v1217 = vcombine.low %v1209, %v1216
    %vm1218 = vcmask 1040384
    %vm1219 = vsmask.f32 0
    %vm1220 = vmand %vm1218, %vm1219
    %vm1221 = vcmask 1041409
    %vm1222 = vsmask.f32 1024
    %vm1223 = vmand %vm1221, %vm1222
    %vm1224 = vmor %vm1223, %vm1220
    %vm1225 = vcmask 1042434
    %vm1226 = vsmask.f32 2048
    %vm1227 = vmand %vm1225, %vm1226
    %vm1228 = vmor %vm1227, %vm1224
    %vm1229 = vcmask 1043459
    %vm1230 = vsmask.f32 3072
    %vm1231 = vmand %vm1229, %vm1230
    %vm1232 = vmor %vm1231, %vm1228
    %vm1233 = vcmask 1044484
    %vm1234 = vsmask.f32 4096
    %vm1235 = vmand %vm1233, %vm1234
    %vm1236 = vmor %vm1235, %vm1232
    %vm1237 = vcmask 1045509
    %vm1238 = vsmask.f32 5120
    %vm1239 = vmand %vm1237, %vm1238
    %vm1240 = vmor %vm1239, %vm1236
    %vm1241 = vcmask 1046534
    %vm1242 = vsmask.f32 6144
    %vm1243 = vmand %vm1241, %vm1242
    %vm1244 = vmor %vm1243, %vm1240
    %vm1245 = vcmask 1047559
    %vm1246 = vsmask.f32 7168
    %vm1247 = vmand %vm1245, %vm1246
    %vm1248 = vmor %vm1247, %vm1244
    %v1249 = vld [vmem:[%s8] sm:$0xff]
    %v1250 = vsel %vm1248, %v1217, %v1249
    %1251 = vst [vmem:[%s8] sm:$0xff] %v1250
    // Predicated region
    $region26: #{simple_dilate_head_forward.1} parent=1 // pred_check
      _
    $region27: #{simple_dilate_head_forward.1} parent=1 // pred_check_branch
      %1253 = sbr.rel (0) target = $region29
    $region28: #{simple_dilate_head_forward.1} parent=1 // pred_region
      %s1255 = ssub.s32 256, 256
      %1256 = vsyncadd [#allocation3], %s1255
      %s1258 = sshll.u32 [#allocation2], 4
      %s1259 = int_to_ptr.vmem [resolvable:$true] %s1258
      %1261 = dma.vmem_to_hbm [thread:$0]  %s1259, 256, %s6, [#allocation3]
    $region29: #{simple_dilate_head_forward.1} parent=1 // pred_fallthru
      _
    // Predicated region
    $region30: #{simple_dilate_head_forward.1} parent=1 // pred_check
      _
    $region31: #{simple_dilate_head_forward.1} parent=1 // pred_check_branch
      %1263 = sbr.rel (0) target = $region33
    $region32: #{simple_dilate_head_forward.1} parent=1 // pred_region
      _
    $region33: #{simple_dilate_head_forward.1} parent=1 // pred_fallthru
      _
    // Predicated region
    $region34: #{simple_dilate_head_forward.1} parent=1 // pred_check
      _
    $region35: #{simple_dilate_head_forward.1} parent=1 // pred_check_branch
      %1265 = sbr.rel (0) target = $region37
    $region36: #{simple_dilate_head_forward.1} parent=1 // pred_region
      _
    $region37: #{simple_dilate_head_forward.1} parent=1 // pred_fallthru
      _
    // Predicated region
    $region38: #{simple_dilate_head_forward.1} parent=1 // pred_check
      _
    $region39: #{simple_dilate_head_forward.1} parent=1 // pred_check_branch
      %1267 = sbr.rel (0) target = $region41
    $region40: #{simple_dilate_head_forward.1} parent=1 // pred_region
      %1268 = dma.done [#allocation3], 256
    $region41: #{simple_dilate_head_forward.1} parent=1 // pred_fallthru
      _
    // Predicated region
    $region42: #{simple_dilate_head_forward.1} parent=1 // pred_check
      _
    $region43: #{simple_dilate_head_forward.1} parent=1 // pred_check_branch
      %1270 = sbr.rel (0) target = $region45
    $region44: #{simple_dilate_head_forward.1} parent=1 // pred_region
      _
    $region45: #{simple_dilate_head_forward.1} parent=1 // pred_fallthru
      _
    // Predicated region
    $region46: #{simple_dilate_head_forward.1} parent=1 // pred_check
      _
    $region47: #{simple_dilate_head_forward.1} parent=1 // pred_check_branch
      %1272 = sbr.rel (0) target = $region49
    $region48: #{simple_dilate_head_forward.1} parent=1 // pred_region
      _
    $region49: #{simple_dilate_head_forward.1} parent=1 // pred_fallthru
      _
    %1273 = vsyncpa [#allocation3], 1

</llo_original>
